<compile_context>
chip_gen: v5e
topology: v5e:2x2
jax: 0.10.0
libtpu: 0.0.40
codegen_flags: <defaults>
</compile_context>

<pallas_src>
import functools

import jax
import jax.numpy as jnp
from jax.experimental import pallas as pl
from jax.experimental.pallas import tpu as pltpu

_BN_EPS = 1e-5
_LANE = 128
_SUBLANE = 8
_BLOCK_BUDGET = 2 * 1024 * 1024      # per-input VMEM block budget (bytes)
_VMEM_LIMIT = 32 * 1024 * 1024       # scoped VMEM limit for the pallas_call
_MIN_GRID_STEPS = 4                  # keep grid deep enough for v7x's 2 TCs


def _round_up(x, m):
    return -(-x // m) * m


def _spatial_weight(xs, w, b):
    """relu6(Conv1x1_{C->1}(x_spa) + folded BN) on a (TB, C, TP) tile."""
    C = xs.shape[1]
    if C >= 64:
        # Large channel count: offload the C-reduction to the otherwise idle MXU.
        sw = jnp.einsum("cd,bcp->bdp", w, xs, preferred_element_type=jnp.float32)
    else:
        # Tiny C: VPU multiply + sublane reduce is cheaper than an MXU pass.
        sw = jnp.sum(xs * w[None, :, :], axis=1, keepdims=True)
    return jnp.clip(sw + b, 0.0, 6.0)


def _fusion_kernel_fused(xspa_ref, xspec_ref, w_ref, b_ref, o_ref, *, inv_p):
    """Grid over images only; pool + channel softmax computed from the tile."""
    xs = xspa_ref[...]            # (TB, C, P)  x_spa
    xp = xspec_ref[...]           # (TB, C, P)  x_spec
    w = w_ref[...]                # (C, 1)      conv weight with BN scale folded
    b = b_ref[0]                  # scalar      folded conv-bias + BN bias (SMEM)

    # Spectral branch: global average pool over P + channel softmax.
    pooled = jnp.sum(xp, axis=-1, keepdims=True) * inv_p         # (TB, C, 1)
    m = jnp.max(pooled, axis=1, keepdims=True)
    e = jnp.exp(pooled - m)
    specw = e / jnp.sum(e, axis=1, keepdims=True)                # (TB, C, 1)

    sw = _spatial_weight(xs, w, b)                               # (TB, 1, P)
    o_ref[...] = sw * xp + specw * xs


def _fusion_kernel_tiled(xspa_ref, xspec_ref, w_ref, b_ref, specw_ref, o_ref):
    """Grid over (image, P-tile); spectral softmax precomputed in the wrapper."""
    xs = xspa_ref[...]            # (1, C, TP)
    xp = xspec_ref[...]
    w = w_ref[...]                # (C, 1)
    b = b_ref[0]                  # scalar (SMEM)
    specw = specw_ref[...]        # (1, C, 1)

    sw = _spatial_weight(xs, w, b)
    o_ref[...] = sw * xp + specw * xs


def _pick_tb(n, slab_bytes, budget, min_steps):
    """Largest divisor of n whose batched slab fits `budget` while keeping the
    grid at least min(n, min_steps) steps deep (for megacore sharding)."""
    cap = max(1, min(n, budget // max(slab_bytes, 1)))
    cap = min(cap, max(1, n // max(1, min(n, min_steps))))
    tb = 1
    for d in range(1, cap + 1):
        if n % d == 0:
            tb = d
    return tb


def fusion_module(x_spa, x_spec, params):
    """x_spa, x_spec: (N, C, H, W) float32.  Returns (N, C, H, W) float32."""
    N, C, H, W = x_spa.shape
    P = H * W

    # NCHW -> (N, C, P): pure reshape, spatial goes onto the lane axis.
    xs = x_spa.reshape(N, C, P)
    xp = x_spec.reshape(N, C, P)

    # Fold eval-mode BatchNorm2d(1) into the 1x1 conv (C -> 1).
    # TODO(synk): training-mode BN (batch statistics) is not supported here.
    scale = params["gamma"] / jnp.sqrt(params["rv"] + _BN_EPS)            # (1,)
    w_eff = params["conv_w"].reshape(C, 1) * scale.reshape(1, 1)          # (C,1)
    b_eff = (params["beta"]
             + (params["conv_b"] - params["rm"]) * scale).reshape(1)      # (1,)
    b_eff = b_eff.astype(jnp.float32)

    # Account for sublane padding (C < 8 pads to 8) in the VMEM block size.
    c_pad = _round_up(max(C, 1), _SUBLANE)
    slab_bytes = c_pad * _round_up(P, _LANE) * 4                 # per-image block

    if slab_bytes <= _BLOCK_BUDGET:
        # ---------- fused path: pool + softmax computed inside the kernel ----
        TB = _pick_tb(N, slab_bytes, _BLOCK_BUDGET, _MIN_GRID_STEPS)
        out = pl.pallas_call(
            functools.partial(_fusion_kernel_fused, inv_p=1.0 / P),
            out_shape=jax.ShapeDtypeStruct((N, C, P), jnp.float32),
            grid=(N // TB,),
            in_specs=[
                pl.BlockSpec((TB, C, P), lambda b: (b, 0, 0)),      # x_spa
                pl.BlockSpec((TB, C, P), lambda b: (b, 0, 0)),      # x_spec
                pl.BlockSpec((C, 1), lambda b: (0, 0)),             # folded weight
                pl.BlockSpec(memory_space=pltpu.MemorySpace.SMEM),  # folded bias
            ],
            out_specs=pl.BlockSpec((TB, C, P), lambda b: (b, 0, 0)),
            compiler_params=pltpu.CompilerParams(
                dimension_semantics=("parallel",),
                vmem_limit_bytes=_VMEM_LIMIT),
        )(xs, xp, w_eff, b_eff)
    else:
        # ---------- tiled path: spectral softmax pre-reduced in the wrapper --
        pooled = jnp.mean(xp, axis=-1)                            # (N, C)
        specw = jax.nn.softmax(pooled, axis=-1).reshape(N, C, 1)

        TP = max(_LANE, (_BLOCK_BUDGET // (c_pad * 4)) // _LANE * _LANE)
        TP = min(TP, _round_up(P, _LANE))
        out = pl.pallas_call(
            _fusion_kernel_tiled,
            out_shape=jax.ShapeDtypeStruct((N, C, P), jnp.float32),
            grid=(N, pl.cdiv(P, TP)),
            in_specs=[
                pl.BlockSpec((1, C, TP), lambda b, p: (b, 0, p)),   # x_spa
                pl.BlockSpec((1, C, TP), lambda b, p: (b, 0, p)),   # x_spec
                pl.BlockSpec((C, 1), lambda b, p: (0, 0)),          # folded weight
                pl.BlockSpec(memory_space=pltpu.MemorySpace.SMEM),  # folded bias
                pl.BlockSpec((1, C, 1), lambda b, p: (b, 0, 0)),    # spectral softmax
            ],
            out_specs=pl.BlockSpec((1, C, TP), lambda b, p: (b, 0, p)),
            compiler_params=pltpu.CompilerParams(
                dimension_semantics=("parallel", "parallel"),
                vmem_limit_bytes=_VMEM_LIMIT),
        )(xs, xp, w_eff, b_eff, specw)

    return out.reshape(N, C, H, W)


def make_params(key, in_ch):
    ks = jax.random.split(key, 2)
    return {
        # Conv2d(in_ch, 1, kernel_size=1) weight (1, C, 1, 1) + bias (1,)
        "conv_w": 0.5 * jax.random.normal(ks[0], (1, in_ch, 1, 1), jnp.float32),
        "conv_b": 0.1 * jax.random.normal(ks[1], (1,), jnp.float32),
        # BatchNorm2d(1) running stats / affine (eval mode)
        "gamma": jnp.array([1.3], jnp.float32),
        "beta": jnp.array([0.05], jnp.float32),
        "rm": jnp.array([0.1], jnp.float32),
        "rv": jnp.array([0.9], jnp.float32),
    }


def _reference(x_spa, x_spec, params):
    """Pure-JAX reference of the eval-mode forward (NCHW in/out)."""
    C = x_spa.shape[1]
    w = params["conv_w"].reshape(C)
    conv = jnp.einsum("nchw,c->nhw", x_spa, w) + params["conv_b"]
    bn = ((conv - params["rm"]) / jnp.sqrt(params["rv"] + _BN_EPS)
          * params["gamma"] + params["beta"])
    spatial_w = jnp.clip(bn, 0.0, 6.0)[:, None, :, :]            # (N,1,H,W)
    pooled = jnp.mean(x_spec, axis=(2, 3))                       # (N,C)
    spectral_w = jax.nn.softmax(pooled, axis=-1)[:, :, None, None]
    return spatial_w * x_spec + spectral_w * x_spa


if __name__ == "__main__":
    key = jax.random.PRNGKey(0)
    k_spa, k_spec, k_p, k_spa2, k_spec2 = jax.random.split(key, 5)

    # Small case -> fused path (pool + channel softmax inside the kernel).
    N, C, H, W = 2, 4, 16, 16
    x_spa = jax.random.normal(k_spa, (N, C, H, W), jnp.float32)
    x_spec = jax.random.normal(k_spec, (N, C, H, W), jnp.float32)
    params = make_params(k_p, C)

    out = jax.block_until_ready(fusion_module(x_spa, x_spec, params))
    ref = _reference(x_spa, x_spec, params)
    assert out.shape == ref.shape
    assert jnp.allclose(out, ref, atol=1e-5, rtol=1e-5), "fused path mismatch"

    # Larger spatial case -> tiled path (exercises the second code path,
    # including a non-lane-aligned final tile).
    N2, C2, H2, W2 = 1, 4, 300, 300
    x_spa2 = jax.random.normal(k_spa2, (N2, C2, H2, W2), jnp.float32)
    x_spec2 = jax.random.normal(k_spec2, (N2, C2, H2, W2), jnp.float32)
    params2 = make_params(k_p, C2)

    out2 = jax.block_until_ready(fusion_module(x_spa2, x_spec2, params2))
    ref2 = _reference(x_spa2, x_spec2, params2)
    assert out2.shape == ref2.shape
    assert jnp.allclose(out2, ref2, atol=1e-5, rtol=1e-5), "tiled path mismatch"

    print("KERNEL_OK")
</pallas_src>

<mosaic_0001>
module attributes {stable_mosaic.version = 11 : i64} {
  func.func @_fusion_kernel_fused(%arg0: i32, %arg1: memref<1x4x256xf32, #tpu.memory_space<vmem>>, %arg2: memref<1x4x256xf32, #tpu.memory_space<vmem>>, %arg3: memref<4x1xf32, #tpu.memory_space<vmem>>, %arg4: memref<1xf32, #tpu.memory_space<smem>>, %arg5: memref<1x4x256xf32, #tpu.memory_space<vmem>>) attributes {dimension_semantics = [#tpu.dimension_semantics<parallel>], iteration_bounds = array<i64: 2>, scalar_prefetch = 0 : i64, scratch_operands = 0 : i64, tpu.core_type = #tpu.core_type<tc>, window_params = [{transform_indices = @transform_0, window_bounds = array<i64: 1, 4, 256>}, {transform_indices = @transform_1, window_bounds = array<i64: 1, 4, 256>}, {pipeline_mode = #tpu.pipeline_mode<synchronous>, transform_indices = @transform_2, window_bounds = array<i64: 4, 1>}, {transform_indices = @transform_3, window_bounds = array<i64: 1>}, {transform_indices = @transform_4, window_bounds = array<i64: 1, 4, 256>}]} {
    %c0 = arith.constant 0 : index
    %c0_0 = arith.constant 0 : index
    %c0_1 = arith.constant 0 : index
    %0 = vector.load %arg1[%c0, %c0_0, %c0_1] : memref<1x4x256xf32, #tpu.memory_space<vmem>>, vector<1x4x256xf32>
    %c0_2 = arith.constant 0 : index
    %c0_3 = arith.constant 0 : index
    %c0_4 = arith.constant 0 : index
    %1 = vector.load %arg2[%c0_2, %c0_3, %c0_4] : memref<1x4x256xf32, #tpu.memory_space<vmem>>, vector<1x4x256xf32>
    %c0_5 = arith.constant 0 : index
    %c0_6 = arith.constant 0 : index
    %2 = vector.load %arg3[%c0_5, %c0_6] : memref<4x1xf32, #tpu.memory_space<vmem>>, vector<4x1xf32>
    %c0_7 = arith.constant 0 : index
    %3 = memref.load %arg4[%c0_7] : memref<1xf32, #tpu.memory_space<smem>>
    %cst = arith.constant dense<0.000000e+00> : vector<1x4xf32>
    %4 = vector.multi_reduction <add>, %1, %cst [2] : vector<1x4x256xf32> to vector<1x4xf32>
    %5 = vector.shape_cast %4 : vector<1x4xf32> to vector<1x4x1xf32>
    %cst_8 = arith.constant 3.906250e-03 : f32
    %6 = vector.broadcast %cst_8 : f32 to vector<1x4x1xf32>
    %7 = arith.mulf %5, %6 : vector<1x4x1xf32>
    %cst_9 = arith.constant dense<0xFF800000> : vector<1x1xf32>
    %8 = vector.multi_reduction <maximumf>, %7, %cst_9 [1] : vector<1x4x1xf32> to vector<1x1xf32>
    %9 = vector.shape_cast %8 : vector<1x1xf32> to vector<1x1x1xf32>
    %10 = vector.broadcast %9 : vector<1x1x1xf32> to vector<1x4x1xf32>
    %11 = arith.subf %7, %10 : vector<1x4x1xf32>
    %12 = math.exp %11 : vector<1x4x1xf32>
    %cst_10 = arith.constant dense<0.000000e+00> : vector<1x1xf32>
    %13 = vector.multi_reduction <add>, %12, %cst_10 [1] : vector<1x4x1xf32> to vector<1x1xf32>
    %14 = vector.shape_cast %13 : vector<1x1xf32> to vector<1x1x1xf32>
    %15 = vector.broadcast %14 : vector<1x1x1xf32> to vector<1x4x1xf32>
    %16 = arith.divf %12, %15 : vector<1x4x1xf32>
    %17 = vector.shape_cast %2 : vector<4x1xf32> to vector<1x4x1xf32>
    %18 = vector.broadcast %17 : vector<1x4x1xf32> to vector<1x4x256xf32>
    %19 = arith.mulf %0, %18 : vector<1x4x256xf32>
    %cst_11 = arith.constant dense<0.000000e+00> : vector<1x256xf32>
    %20 = vector.multi_reduction <add>, %19, %cst_11 [1] : vector<1x4x256xf32> to vector<1x256xf32>
    %21 = vector.shape_cast %20 : vector<1x256xf32> to vector<1x1x256xf32>
    %22 = vector.broadcast %3 : f32 to vector<1x1x256xf32>
    %23 = arith.addf %21, %22 : vector<1x1x256xf32>
    %cst_12 = arith.constant 0.000000e+00 : f32
    %cst_13 = arith.constant 6.000000e+00 : f32
    %24 = vector.broadcast %cst_12 : f32 to vector<1x1x256xf32>
    %25 = arith.maximumf %24, %23 : vector<1x1x256xf32>
    %26 = vector.broadcast %cst_13 : f32 to vector<1x1x256xf32>
    %27 = arith.minimumf %26, %25 : vector<1x1x256xf32>
    %28 = vector.broadcast %27 : vector<1x1x256xf32> to vector<1x4x256xf32>
    %29 = arith.mulf %28, %1 : vector<1x4x256xf32>
    %30 = vector.broadcast %16 : vector<1x4x1xf32> to vector<1x4x256xf32>
    %31 = arith.mulf %30, %0 : vector<1x4x256xf32>
    %32 = arith.addf %29, %31 : vector<1x4x256xf32>
    %c0_14 = arith.constant 0 : index
    %c0_15 = arith.constant 0 : index
    %c0_16 = arith.constant 0 : index
    %33 = vector.load %arg5[%c0_14, %c0_15, %c0_16] : memref<1x4x256xf32, #tpu.memory_space<vmem>>, vector<1x4x256xf32>
    tpu.vector_store %arg5[%c0_14, %c0_15, %c0_16], %32 {strides = array<i32>} : memref<1x4x256xf32, #tpu.memory_space<vmem>>, vector<1x4x256xf32>,
    return
  }
  func.func @transform_0(%arg0: i32) -> (i32, i32, i32) {
    %c0_i32 = arith.constant 0 : i32
    %c0_i32_0 = arith.constant 0 : i32
    %c0_i32_1 = arith.constant 0 : i32
    return %arg0, %c0_i32, %c0_i32_0 : i32, i32, i32
  }
  func.func @transform_1(%arg0: i32) -> (i32, i32, i32) {
    %c0_i32 = arith.constant 0 : i32
    %c0_i32_0 = arith.constant 0 : i32
    %c0_i32_1 = arith.constant 0 : i32
    return %arg0, %c0_i32, %c0_i32_0 : i32, i32, i32
  }
  func.func @transform_2(%arg0: i32) -> (i32, i32) {
    %c0_i32 = arith.constant 0 : i32
    %c0_i32_0 = arith.constant 0 : i32
    %c0_i32_1 = arith.constant 0 : i32
    return %c0_i32, %c0_i32_0 : i32, i32
  }
  func.func @transform_3(%arg0: i32) -> i32 {
    %c0_i32 = arith.constant 0 : i32
    %c0_i32_0 = arith.constant 0 : i32
    return %c0_i32 : i32
  }
  func.func @transform_4(%arg0: i32) -> (i32, i32, i32) {
    %c0_i32 = arith.constant 0 : i32
    %c0_i32_0 = arith.constant 0 : i32
    %c0_i32_1 = arith.constant 0 : i32
    return %arg0, %c0_i32, %c0_i32_0 : i32, i32, i32
  }
}

</mosaic_0001>

<llo_original>
// kernel: tpu_custom_call.1
$region0: #{tpu_custom_call.1}
  #allocation0 [shape = 'u32[]', space=smem, size = 0x4, offset = 0x4, fixed_abs, tag = 'smem constant byte address 0x4 - core index']
  #allocation1 [shape = 'u32[72,128]{1,0:T(1,128)}', space=vmem, size = 0x9000, scoped, tag = 'internal scratch']
  #allocation2 [shape = 'f32[1]{0:T(128)S(6)}', space=smem, size = 0x200, scoped, tag = 'scoped memory for tpu_custom_call.1']
  %s0 = inlined_call_operand.hbm [shape: f32[2,4,256], index: 0, kind: input, shape index: {}]
  %s1 = inlined_call_operand.hbm [shape: f32[2,4,256], index: 1, kind: input, shape index: {}]
  %s2 = inlined_call_operand.vmem [shape: f32[4,1], index: 2, kind: input, shape index: {}]
  %s3 = inlined_call_operand.<no memory space> [shape: f32[1], index: 3, kind: input, shape index: {}]
  %s4 = inlined_call_operand.hbm [shape: f32[2,4,256], index: 4, kind: output, shape index: {}]
  %s5 = sld [smem:[#allocation0]]
  $region57: #{tpu_custom_call.1} parent=0
    _
  %s7 = ssub.s32 1, %s5
  %s8 = scalar_select 0, %s7, %s5
  %9 = sst [smem:[#allocation2]] %s3
  $region1: #{tpu_custom_call.1} parent=0
    #allocation3 [shape = 'u8[8192]{0}', space=vmem, size = 0x2000, scoped, tag = 'input window, operand 0']
    #allocation4 [shape = 's32[2]{0}', space=sflag, size = 0x8, scoped, tag = 'scoped memory for tpu_custom_call.1']
    #allocation5 [shape = 's32[2]{0}', space=sflag, size = 0x8, scoped, tag = 'scoped memory for tpu_custom_call.1']
    #allocation6 [shape = 'u8[8192]{0}', space=vmem, size = 0x2000, scoped, tag = 'input window, operand 1']
    #allocation7 [shape = 's32[2]{0}', space=sflag, size = 0x8, scoped, tag = 'scoped memory for tpu_custom_call.1']
    #allocation8 [shape = 'u8[8192]{0}', space=vmem, size = 0x2000, scoped, tag = 'output window, operand 0']
    %10 = vsyncpa [#allocation4], 0
    %s11 = scalar_lea.sflag [#allocation4], 1
    %12 = vsyncpa %s11, 0
    %13 = vsyncpa [#allocation7], 0
    %s14 = scalar_lea.sflag [#allocation7], 1
    %15 = vsyncpa %s14, 0
    %16 = vsyncpa [#allocation5], 0
    %s17 = scalar_lea.sflag [#allocation5], 1
    %18 = vsyncpa %s17, 0
    loop: start=0, step=1, limit=4
    $region2: #{tpu_custom_call.1} parent=1 // loop_pre_header
      _
    $region3: #{tpu_custom_call.1} parent=1 // loop_header
      %s20 = sphi 0, %s24
      %p21 = scmp.ge.s32.totalorder %s20, 4
      %s30 = sphi 0, %s32
      %s33 = sphi 0, %s30
      %s34 = sphi 0, %s33
      %s50 = sphi 0, %s34
      %s56 = sphi 0, %s58
      %s59 = sphi 0, %s56
      %s60 = sphi 0, %s59
      %s76 = sphi 0, %s60
      %s80 = sphi 0, %s80
      %s82 = sphi 0, %s80
      %s83 = sphi 0, %s82
      %s97 = sphi 0, %s83
      %s101 = sphi 0, %s101
      %s103 = sphi 0, %s101
      %s104 = sphi 0, %s103
      %s118 = sphi 0, %s104
      %s124 = sphi 0, %s126
      %s127 = sphi 0, %s124
      %s128 = sphi 0, %s127
      %s144 = sphi 0, %s128
    $region4: #{tpu_custom_call.1} parent=1 // loop_header_branch
      %23 = sbr.rel (%p21) target = $region8
    $region5: #{tpu_custom_call.1} parent=1 // loop_body
      %s25 = ssub.s32 %s20, 1
      %s26 = ssub.s32 %s20, 2
      %s27 = sadd.s32 %s20, 1
      %s28 = ssub.s32 %s20, %s27
      %p29 = scmp.eq.s32.totalorder %s28, 0
      %s31 = sadd.s32 %s30, 1
      %s32 = scalar_select %p29, %s30, %s31
      %p35 = pneg %p29
      %p36 = scmp.eq.s32.totalorder %s20, 1
      %p37 = por %p35, %p36
      %p38 = scmp.ne.s32.totalorder %s30, %s33
      %p39 = scmp.eq.s32.totalorder %s20, 0
      %p40 = por %p38, %p39
      %p41 = scmp.ne.s32.totalorder %s30, %s33
      %p42 = scmp.eq.s32.totalorder %s25, 1
      %p43 = por %p41, %p42
      %p44 = scmp.ne.s32.totalorder %s33, %s34
      %p45 = scmp.eq.s32.totalorder %s25, 0
      %p46 = por %p44, %p45
      %p47 = scmp.ne.s32.totalorder %s33, %s34
      %p48 = scmp.eq.s32.totalorder %s26, 1
      %p49 = por %p47, %p48
      %p51 = scmp.ne.s32.totalorder %s34, %s50
      %p52 = scmp.eq.s32.totalorder %s26, 0
      %p53 = por %p51, %p52
      %s54 = ssub.s32 %s20, %s27
      %p55 = scmp.eq.s32.totalorder %s54, 0
      %s57 = sadd.s32 %s56, 1
      %s58 = scalar_select %p55, %s56, %s57
      %p61 = pneg %p55
      %p62 = scmp.eq.s32.totalorder %s20, 1
      %p63 = por %p61, %p62
      %p64 = scmp.ne.s32.totalorder %s56, %s59
      %p65 = scmp.eq.s32.totalorder %s20, 0
      %p66 = por %p64, %p65
      %p67 = scmp.ne.s32.totalorder %s56, %s59
      %p68 = scmp.eq.s32.totalorder %s25, 1
      %p69 = por %p67, %p68
      %p70 = scmp.ne.s32.totalorder %s59, %s60
      %p71 = scmp.eq.s32.totalorder %s25, 0
      %p72 = por %p70, %p71
      %p73 = scmp.ne.s32.totalorder %s59, %s60
      %p74 = scmp.eq.s32.totalorder %s26, 1
      %p75 = por %p73, %p74
      %p77 = scmp.ne.s32.totalorder %s60, %s76
      %p78 = scmp.eq.s32.totalorder %s26, 0
      %p79 = por %p77, %p78
      %s81 = sadd.s32 %s80, 1
      %p84 = scmp.eq.s32.totalorder %s20, 1
      %p85 = scmp.ne.s32.totalorder %s80, %s82
      %p86 = scmp.eq.s32.totalorder %s20, 0
      %p87 = por %p85, %p86
      %p88 = scmp.ne.s32.totalorder %s80, %s82
      %p89 = scmp.eq.s32.totalorder %s25, 1
      %p90 = por %p88, %p89
      %p91 = scmp.ne.s32.totalorder %s82, %s83
      %p92 = scmp.eq.s32.totalorder %s25, 0
      %p93 = por %p91, %p92
      %p94 = scmp.ne.s32.totalorder %s82, %s83
      %p95 = scmp.eq.s32.totalorder %s26, 1
      %p96 = por %p94, %p95
      %p98 = scmp.ne.s32.totalorder %s83, %s97
      %p99 = scmp.eq.s32.totalorder %s26, 0
      %p100 = por %p98, %p99
      %s102 = sadd.s32 %s101, 1
      %p105 = scmp.eq.s32.totalorder %s20, 1
      %p106 = scmp.ne.s32.totalorder %s101, %s103
      %p107 = scmp.eq.s32.totalorder %s20, 0
      %p108 = por %p106, %p107
      %p109 = scmp.ne.s32.totalorder %s101, %s103
      %p110 = scmp.eq.s32.totalorder %s25, 1
      %p111 = por %p109, %p110
      %p112 = scmp.ne.s32.totalorder %s103, %s104
      %p113 = scmp.eq.s32.totalorder %s25, 0
      %p114 = por %p112, %p113
      %p115 = scmp.ne.s32.totalorder %s103, %s104
      %p116 = scmp.eq.s32.totalorder %s26, 1
      %p117 = por %p115, %p116
      %p119 = scmp.ne.s32.totalorder %s104, %s118
      %p120 = scmp.eq.s32.totalorder %s26, 0
      %p121 = por %p119, %p120
      %s122 = ssub.s32 %s20, %s27
      %p123 = scmp.eq.s32.totalorder %s122, 0
      %s125 = sadd.s32 %s124, 1
      %s126 = scalar_select %p123, %s124, %s125
      %p129 = pneg %p123
      %p130 = scmp.eq.s32.totalorder %s20, 1
      %p131 = por %p129, %p130
      %p132 = scmp.ne.s32.totalorder %s124, %s127
      %p133 = scmp.eq.s32.totalorder %s20, 0
      %p134 = por %p132, %p133
      %p135 = scmp.ne.s32.totalorder %s124, %s127
      %p136 = scmp.eq.s32.totalorder %s25, 1
      %p137 = por %p135, %p136
      %p138 = scmp.ne.s32.totalorder %s127, %s128
      %p139 = scmp.eq.s32.totalorder %s25, 0
      %p140 = por %p138, %p139
      %p141 = scmp.ne.s32.totalorder %s127, %s128
      %p142 = scmp.eq.s32.totalorder %s26, 1
      %p143 = por %p141, %p142
      %p145 = scmp.ne.s32.totalorder %s128, %s144
      %p146 = scmp.eq.s32.totalorder %s26, 0
      %p147 = por %p145, %p146
      %p148 = scmp.le.s32.totalorder 1, %s20
      %p149 = scmp.lt.s32.totalorder %s20, 3
      %p150 = pnand %p148, %p149
      %p151 = pneg %p150
      // Predicated region
      $region9: #{tpu_custom_call.1} parent=5 // pred_check
        _
      $region10: #{tpu_custom_call.1} parent=5 // pred_check_branch
        %153 = sbr.rel (%p150) target = $region12
      $region11: #{tpu_custom_call.1} parent=5 // pred_region
        %s154 = ssub.s32 %s20, 1
        // Predicated region
        $region13: #{tpu_custom_call.1} parent=11 // pred_check
          %p155 = pneg %p93
        $region14: #{tpu_custom_call.1} parent=11 // pred_check_branch
          %157 = sbr.rel (%p155) target = $region16
        $region15: #{tpu_custom_call.1} parent=11 // pred_region
          _
        $region16: #{tpu_custom_call.1} parent=11 // pred_fallthru
          _
        // Predicated region
        $region17: #{tpu_custom_call.1} parent=11 // pred_check
          %p158 = pneg %p114
        $region18: #{tpu_custom_call.1} parent=11 // pred_check_branch
          %160 = sbr.rel (%p158) target = $region20
        $region19: #{tpu_custom_call.1} parent=11 // pred_region
          _
        $region20: #{tpu_custom_call.1} parent=11 // pred_fallthru
          _
      $region12: #{tpu_custom_call.1} parent=5 // pred_fallthru
        _
      %p161 = scmp.lt.s32.totalorder %s20, 2
      // Predicated region
      $region21: #{tpu_custom_call.1} parent=5 // pred_check
        %p162 = pneg %p161
      $region22: #{tpu_custom_call.1} parent=5 // pred_check_branch
        %164 = sbr.rel (%p162) target = $region24
      $region23: #{tpu_custom_call.1} parent=5 // pred_region
        // Predicated region
        $region25: #{tpu_custom_call.1} parent=23 // pred_check
          %p165 = pneg %p40
        $region26: #{tpu_custom_call.1} parent=23 // pred_check_branch
          %167 = sbr.rel (%p165) target = $region28
        $region27: #{tpu_custom_call.1} parent=23 // pred_region
          %s168 = sand.u32 %s30, 1
          %s169 = scalar_lea.sflag [#allocation4], %s168
          %s170 = sand.u32 %s30, 1
          %s171 = smul.addr %s170, 8
          %s172 = scalar_lea.vmem [#allocation3], %s171
          %174 = vsyncadd %s169, 0
          %s175 = smul.addr %s20, 2
          %s176 = smul.addr %s175, 4
          %s177 = scalar_lea.hbm %s0, %s176
          %s179 = sshll.u32 %s177, 4
          %s180 = int_to_ptr.hbm [resolvable:$true] %s179
          %s181 = sshll.u32 %s172, 4
          %s182 = int_to_ptr.vmem [resolvable:$true] %s181
          %184 = dma.hbm_to_vmem [thread:$0]  %s180, 128, %s182, %s169
        $region28: #{tpu_custom_call.1} parent=23 // pred_fallthru
          _
        // Predicated region
        $region29: #{tpu_custom_call.1} parent=23 // pred_check
          %p185 = pneg %p66
        $region30: #{tpu_custom_call.1} parent=23 // pred_check_branch
          %187 = sbr.rel (%p185) target = $region32
        $region31: #{tpu_custom_call.1} parent=23 // pred_region
          %s188 = sand.u32 %s56, 1
          %s189 = scalar_lea.sflag [#allocation7], %s188
          %s190 = sand.u32 %s56, 1
          %s191 = smul.addr %s190, 8
          %s192 = scalar_lea.vmem [#allocation6], %s191
          %194 = vsyncadd %s189, 0
          %s195 = smul.addr %s20, 2
          %s196 = smul.addr %s195, 4
          %s197 = scalar_lea.hbm %s1, %s196
          %s199 = sshll.u32 %s197, 4
          %s200 = int_to_ptr.hbm [resolvable:$true] %s199
          %s201 = sshll.u32 %s192, 4
          %s202 = int_to_ptr.vmem [resolvable:$true] %s201
          %204 = dma.hbm_to_vmem [thread:$0]  %s200, 128, %s202, %s189
        $region32: #{tpu_custom_call.1} parent=23 // pred_fallthru
          _
      $region24: #{tpu_custom_call.1} parent=5 // pred_fallthru
        _
      %p205 = scmp.le.s32.totalorder 1, %s20
      %p206 = scmp.lt.s32.totalorder %s20, 3
      %p207 = pnand %p205, %p206
      %p208 = pneg %p207
      // Predicated region
      $region33: #{tpu_custom_call.1} parent=5 // pred_check
        _
      $region34: #{tpu_custom_call.1} parent=5 // pred_check_branch
        %210 = sbr.rel (%p207) target = $region36
      $region35: #{tpu_custom_call.1} parent=5 // pred_region
        %s211 = ssub.s32 %s20, 1
        %s212 = sand.u32 %s33, 1
        %s213 = scalar_lea.sflag [#allocation4], %s212
        %s214 = sand.u32 %s33, 1
        %s215 = smul.addr %s214, 8
        %s216 = scalar_lea.vmem [#allocation3], %s215
        // Predicated region
        $region37: #{tpu_custom_call.1} parent=35 // pred_check
          %p217 = pneg %p46
        $region38: #{tpu_custom_call.1} parent=35 // pred_check_branch
          %219 = sbr.rel (%p217) target = $region40
        $region39: #{tpu_custom_call.1} parent=35 // pred_region
          %221 = dma.done %s213, 128
        $region40: #{tpu_custom_call.1} parent=35 // pred_fallthru
          _
        %s222 = sand.u32 %s59, 1
        %s223 = scalar_lea.sflag [#allocation7], %s222
        %s224 = sand.u32 %s59, 1
        %s225 = smul.addr %s224, 8
        %s226 = scalar_lea.vmem [#allocation6], %s225
        // Predicated region
        $region41: #{tpu_custom_call.1} parent=35 // pred_check
          %p227 = pneg %p72
        $region42: #{tpu_custom_call.1} parent=35 // pred_check_branch
          %229 = sbr.rel (%p227) target = $region44
        $region43: #{tpu_custom_call.1} parent=35 // pred_region
          %231 = dma.done %s223, 128
        $region44: #{tpu_custom_call.1} parent=35 // pred_fallthru
          _
        %s232 = sand.u32 %s33, 1
        %s233 = scalar_lea.sflag [#allocation4], %s232
        %s234 = sand.u32 %s33, 1
        %s235 = smul.addr %s234, 8
        %s236 = scalar_lea.vmem [#allocation3], %s235
        %p237 = pneg %p46
        %p238 = pneg %p43
        %s239 = sand.u32 %s59, 1
        %s240 = scalar_lea.sflag [#allocation7], %s239
        %s241 = sand.u32 %s59, 1
        %s242 = smul.addr %s241, 8
        %s243 = scalar_lea.vmem [#allocation6], %s242
        %p244 = pneg %p72
        %p245 = pneg %p69
        %p246 = pneg %p93
        %p247 = pneg %p90
        %p248 = pneg %p114
        %p249 = pneg %p111
        %p250 = pneg %p140
        %p251 = pneg %p137
        %s252 = sand.u32 %s127, 1
        %s253 = scalar_lea.sflag [#allocation5], %s252
        %s254 = sand.u32 %s127, 1
        %s255 = smul.addr %s254, 8
        %s256 = scalar_lea.vmem [#allocation8], %s255
        %v257 = vld [vmem:[%s216] sm:$0xff]
        %v258 = vld [vmem:[%s226] sm:$0xff]
        %v259 = vld [vmem:[%s2] sm:$0xf]
        %s260 = sld [smem:[#allocation2]]
        %262 = vst [vmem:[#allocation1] ss:$2 sm:$0xff] %v258
        %v263 = vld.sshfl [vmem:[#allocation1] sm:$0xff pattern:$0x75316420]
        %v264 = vld.sshfl [vmem:[#allocation1 + $0x8] sm:$0xff pattern:$0x75316420]
        %vm267 = vcmask 1043456
        %v268 = vsel %vm267, %v263, 0.0
        %v269 = vsel %vm267, %v264, 0.0
        %v270 = vadd.f32 %v268, %v269
        %271 = vadd.xlane.f32.xlu0 %v270
        %v272 = vpop.xlane.xlu0 %271
        %v273 = vmul.f32 %v272, 0.00390625
        %v274 = vsel %vm267, %v273, -inf
        %v275 = vrot.slane %v274, 4
        %v276 = vmax.f32 %v274, %v275
        %v277 = vrot.slane %v276, 2
        %v278 = vmax.f32 %v276, %v277
        %v279 = vrot.slane %v278, 1
        %v280 = vmax.f32 %v278, %v279
        %v281 = vsub.f32 %v273, %v280
        %v282 = vmul.f32 %v281, 1.442695
        %v283 = vpow.pop %v282
        %v284 = vsel %vm267, %v283, 0.0
        %v285 = vrot.slane %v284, 4
        %v286 = vadd.f32 %v284, %v285
        %v287 = vrot.slane %v286, 2
        %v288 = vadd.f32 %v286, %v287
        %v289 = vrot.slane %v288, 1
        %v290 = vadd.f32 %v288, %v289
        %v291 = vrcp.pop %v290
        %v292 = vmul.f32 %v290, %v291
        %v293 = vsub.f32 1.0, %v292
        %v294 = vmul.f32 %v291, %v293
        %v295 = vadd.f32 %v291, %v294
        %vm296 = vweird.f32 %v290
        %vm297 = vweird.f32 %v291
        %vm298 = vmor %vm296, %vm297
        %v299 = vsel %vm298, %v291, %v295
        %v300 = vand.u32 2147483647, %v290
        %vm301 = vcmp.eq.f32.partialorder %v300, 8.507059e+37
        %v302 = vand.u32 %v290, 2147483648
        %v303 = vor.u32 1.1754944e-38, %v302
        %v304 = vsel %vm301, %v303, %v299
        %v305 = vmul.f32 %v283, %v304
        %307 = vset.pattern.permute.xlu0 0
        %308 = vperm.xlu0 %307, %v259
        %v309 = vpop.permute.xlu0 %308
        %v311 = vunpack.c.l.s4 839922192
        %v312 = vunpack.c.0.s8 %v311
        %v313 = vperm.slane %v309, %v312
        %v315 = vmul.f32 %v257, %v313
        %317 = vst [vmem:[#allocation1] ss:$2 sm:$0xff] %v315
        %v318 = vld.sshfl [vmem:[#allocation1] sm:$0xff pattern:$0x75316420]
        %v319 = vld.sshfl [vmem:[#allocation1 + $0x8] sm:$0xff pattern:$0x75316420]
        %v322 = vsel %vm267, %v318, 0.0
        %v323 = vrot.slane %v322, 4
        %v324 = vadd.f32 %v322, %v323
        %v325 = vrot.slane %v324, 2
        %v326 = vadd.f32 %v324, %v325
        %v327 = vrot.slane %v326, 1
        %v328 = vadd.f32 %v326, %v327
        %v329 = vsel %vm267, %v319, 0.0
        %v330 = vrot.slane %v329, 4
        %v331 = vadd.f32 %v329, %v330
        %v332 = vrot.slane %v331, 2
        %v333 = vadd.f32 %v331, %v332
        %v334 = vrot.slane %v333, 1
        %v335 = vadd.f32 %v333, %v334
        %v336 = vstv %s260
        %v337 = vadd.f32 %v328, %v336
        %v338 = vadd.f32 %v335, %v336
        %v339 = vmax.f32 %v337, 0.0
        %v340 = vmax.f32 %v338, 0.0
        %v341 = vmin.f32 %v339, 6.0
        %v342 = vmin.f32 %v340, 6.0
        %343 = vst [vmem:[#allocation1] ss:$2 sm:$0xff] %v258
        %v344 = vld.sshfl [vmem:[#allocation1] sm:$0xff pattern:$0x75316420]
        %v345 = vld.sshfl [vmem:[#allocation1 + $0x8] sm:$0xff pattern:$0x75316420]
        %v348 = vmul.f32 %v341, %v344
        %v349 = vmul.f32 %v342, %v345
        %351 = vst [vmem:[#allocation1] ss:$2 sm:$0xff] %v257
        %v352 = vld.sshfl [vmem:[#allocation1] sm:$0xff pattern:$0x75316420]
        %v353 = vld.sshfl [vmem:[#allocation1 + $0x8] sm:$0xff pattern:$0x75316420]
        %v356 = vmul.f32 %v305, %v352
        %v357 = vmul.f32 %v305, %v353
        %v358 = vadd.f32 %v348, %v356
        %v359 = vadd.f32 %v349, %v357
        %v362 = vrot.slane %v359, 4
        %v363 = vsel %vm267, %v358, %v362
        %365 = vst [vmem:[%s256] sm:$0xff] %v363
        %s366 = sand.u32 %s127, 1
        %s367 = scalar_lea.sflag [#allocation5], %s366
        %s368 = sand.u32 %s127, 1
        %s369 = smul.addr %s368, 8
        %s370 = scalar_lea.vmem [#allocation8], %s369
        // Predicated region
        $region45: #{tpu_custom_call.1} parent=35 // pred_check
          %p371 = pneg %p137
        $region46: #{tpu_custom_call.1} parent=35 // pred_check_branch
          %373 = sbr.rel (%p371) target = $region48
        $region47: #{tpu_custom_call.1} parent=35 // pred_region
          %375 = vsyncadd %s367, 0
          %s376 = smul.addr %s25, 2
          %s377 = smul.addr %s376, 4
          %s378 = scalar_lea.hbm %s4, %s377
          %s380 = sshll.u32 %s370, 4
          %s381 = int_to_ptr.vmem [resolvable:$true] %s380
          %s382 = sshll.u32 %s378, 4
          %s383 = int_to_ptr.hbm [resolvable:$true] %s382
          %385 = dma.vmem_to_hbm [thread:$0]  %s381, 128, %s383, %s367
        $region48: #{tpu_custom_call.1} parent=35 // pred_fallthru
          _
      $region36: #{tpu_custom_call.1} parent=5 // pred_fallthru
        _
      %p386 = scmp.le.s32.totalorder 2, %s20
      // Predicated region
      $region49: #{tpu_custom_call.1} parent=5 // pred_check
        %p387 = pneg %p386
      $region50: #{tpu_custom_call.1} parent=5 // pred_check_branch
        %389 = sbr.rel (%p387) target = $region52
      $region51: #{tpu_custom_call.1} parent=5 // pred_region
        %s390 = ssub.s32 %s20, 2
        // Predicated region
        $region53: #{tpu_custom_call.1} parent=51 // pred_check
          %p391 = pneg %p143
        $region54: #{tpu_custom_call.1} parent=51 // pred_check_branch
          %393 = sbr.rel (%p391) target = $region56
        $region55: #{tpu_custom_call.1} parent=51 // pred_region
          %s394 = sand.u32 %s128, 1
          %s395 = scalar_lea.sflag [#allocation5], %s394
          %s396 = sand.u32 %s128, 1
          %s397 = smul.addr %s396, 8
          %s398 = scalar_lea.vmem [#allocation8], %s397
          %400 = dma.done %s395, 128
        $region56: #{tpu_custom_call.1} parent=51 // pred_fallthru
          _
      $region52: #{tpu_custom_call.1} parent=5 // pred_fallthru
        _
    $region6: #{tpu_custom_call.1} parent=1 // loop_footer
      %s24 = sadd.s32 1, %s20
    $region7: #{tpu_custom_call.1} parent=1 // loop_footer_branch
      %19 = sbr.rel target = $region3
    $region8: #{tpu_custom_call.1} parent=1 // loop_exit
      _
    %401 = vsyncpa [#allocation4], 1
    %s402 = scalar_lea.sflag [#allocation4], 1
    %403 = vsyncpa %s402, 1
    %404 = vsyncpa [#allocation7], 1
    %s405 = scalar_lea.sflag [#allocation7], 1
    %406 = vsyncpa %s405, 1
    %407 = vsyncpa [#allocation5], 1
    %s408 = scalar_lea.sflag [#allocation5], 1
    %409 = vsyncpa %s408, 1

</llo_original>
